<compile_context>
chip_gen: v6e
topology: v6e:2x2x1
jax: 0.10.0
libtpu: 0.0.40
codegen_flags: <defaults>
</compile_context>

<pallas_src>
import functools

import jax
import jax.numpy as jnp
from jax.experimental import pallas as pl
from jax.experimental.pallas import tpu as pltpu


def _vmem():
    # whole-array block resident in VMEM (all shapes here are small)
    return pl.BlockSpec(memory_space=pltpu.MemorySpace.VMEM)


# --------------------- fused 2-layer GraphSAGE kernel ----------------------

def _sage_kernel(adj_ref, x_ref, w1s_ref, w1n_ref, b1_ref,
                 w2s_ref, w2n_ref, b2_ref, o_ref):
    adj = adj_ref[...]
    x = x_ref[...]
    # layer 1: mean-aggregated neighbours, self+neigh linear, bias, ReLU
    # (x @ Ws + n @ Wn is mathematically identical to the concat([x,n]) @
    #  concat([Ws;Wn]) single-push form; kept as two dots at these tiny K.)
    n1 = jnp.dot(adj, x, preferred_element_type=jnp.float32)
    h1 = (jnp.dot(x, w1s_ref[...], preferred_element_type=jnp.float32)
          + jnp.dot(n1, w1n_ref[...], preferred_element_type=jnp.float32)
          + b1_ref[...])
    h1 = jnp.maximum(h1, 0.0)
    # layer 2
    n2 = jnp.dot(adj, h1, preferred_element_type=jnp.float32)
    o_ref[...] = (jnp.dot(h1, w2s_ref[...], preferred_element_type=jnp.float32)
                  + jnp.dot(n2, w2n_ref[...], preferred_element_type=jnp.float32)
                  + b2_ref[...])


def pallas_sage(adj, x, p):
    n = x.shape[0]
    hidden = p["sage_w1_self"].shape[1]
    return pl.pallas_call(
        _sage_kernel,
        out_shape=jax.ShapeDtypeStruct((n, hidden), jnp.float32),
        in_specs=[_vmem()] * 8,
        out_specs=_vmem(),
    )(adj, x,
      p["sage_w1_self"], p["sage_w1_neigh"], p["sage_b1"].reshape(1, -1),
      p["sage_w2_self"], p["sage_w2_neigh"], p["sage_b2"].reshape(1, -1))


# -------------------- fully fused Mega regressor kernel --------------------

def _mega_kernel(seq_ref, w_emb_ref, b_emb_ref, pos_ref,
                 wqkv_ref, bqkv_ref, wo_ref, bo_ref,
                 pool_ref, w_fc1_ref, b_fc1_ref, w_fc2_ref, b_fc2_ref,
                 w_out_ref, b_out_ref,
                 out_ref,
                 qkv_scr, attn_scr,
                 *, batch, seq_len, d_model, n_heads, n_layers):
    dh = d_model // n_heads
    scale = 1.0 / float(dh) ** 0.5

    # token embedding (scalar -> d_model) fused with positional embedding add
    h = seq_ref[...] * w_emb_ref[...] + b_emb_ref[...] + pos_ref[...]   # (B*S, D)

    for layer in range(n_layers):
        # fused Q/K/V projection: one (B*S, D) @ (D, 3D) MXU matmul
        qkv_scr[...] = (jnp.dot(h, wqkv_ref[layer],
                                preferred_element_type=jnp.float32)
                        + bqkv_ref[layer])
        # per (batch, head) attention on static slices of the QKV slab
        for b in range(batch):
            rows = pl.ds(b * seq_len, seq_len)
            for hd in range(n_heads):
                q = qkv_scr[rows, pl.ds(hd * dh, dh)]
                k = qkv_scr[rows, pl.ds(d_model + hd * dh, dh)]
                v = qkv_scr[rows, pl.ds(2 * d_model + hd * dh, dh)]
                s = jnp.dot(q, k.T, preferred_element_type=jnp.float32) * scale
                s = s - jnp.max(s, axis=-1, keepdims=True)
                p = jnp.exp(s)
                p = p * pl.reciprocal(jnp.sum(p, axis=-1, keepdims=True),
                                      approx=True)
                attn_scr[rows, pl.ds(hd * dh, dh)] = jnp.dot(
                    p, v, preferred_element_type=jnp.float32)
        # output projection + residual, all in-kernel
        h = h + (jnp.dot(attn_scr[...], wo_ref[layer],
                         preferred_element_type=jnp.float32)
                 + bo_ref[layer])

    # mean pooling over the sequence as a single MXU matmul with a
    # block-diagonal averaging matrix (B, B*S) @ (B*S, D) -> (B, D)
    pooled = jnp.dot(pool_ref[...], h, preferred_element_type=jnp.float32)

    # MLP head (fc1 -> ReLU -> fc2 -> ReLU -> out), fused
    z = jnp.dot(pooled, w_fc1_ref[...], preferred_element_type=jnp.float32) + b_fc1_ref[...]
    z = jnp.maximum(z, 0.0)
    z = jnp.dot(z, w_fc2_ref[...], preferred_element_type=jnp.float32) + b_fc2_ref[...]
    z = jnp.maximum(z, 0.0)
    out_ref[...] = (jnp.dot(z, w_out_ref[...], preferred_element_type=jnp.float32)
                    + b_out_ref[...])


def pallas_mega(p, seq2d, batch, seq_len):
    d_model = p["w_emb"].shape[1]
    n_heads = p["num_heads"]
    n_layers = p["wqkv"].shape[0]
    out_channels = p["w_out"].shape[1]

    assert seq_len <= p["pos_emb"].shape[0], "sequence length exceeds max_pos"

    # glue: tile positional embedding to the (B*S, D) slab and build the
    # mean-pooling matrix (both tiny, computed outside the kernel)
    pos_tiled = jnp.tile(p["pos_emb"][:seq_len], (batch, 1))
    pool = jnp.kron(jnp.eye(batch, dtype=jnp.float32),
                    jnp.ones((1, seq_len), jnp.float32) / float(seq_len))

    kernel = functools.partial(
        _mega_kernel, batch=batch, seq_len=seq_len, d_model=d_model,
        n_heads=n_heads, n_layers=n_layers)

    return pl.pallas_call(
        kernel,
        out_shape=jax.ShapeDtypeStruct((batch, out_channels), jnp.float32),
        in_specs=[_vmem()] * 15,
        out_specs=_vmem(),
        scratch_shapes=[
            pltpu.VMEM((batch * seq_len, 3 * d_model), jnp.float32),  # QKV slab
            pltpu.VMEM((batch * seq_len, d_model), jnp.float32),      # attn out
        ],
    )(seq2d,
      p["w_emb"], p["b_emb"].reshape(1, -1), pos_tiled,
      p["wqkv"], p["bqkv"], p["wo"], p["bo"],
      pool,
      p["w_fc1"], p["b_fc1"].reshape(1, -1),
      p["w_fc2"], p["b_fc2"].reshape(1, -1),
      p["w_out"], p["b_out"].reshape(1, -1))


# ----------------------------- parameter init ------------------------------

def _xavier(key, shape):
    fan_in, fan_out = shape[0], shape[1]
    lim = (6.0 / (fan_in + fan_out)) ** 0.5
    return jax.random.uniform(key, shape, jnp.float32, -lim, lim)


def init_params(key, *, in_channels, hidden_channels, out_channels,
                hidden1, hidden2, num_layers, num_heads, head_dim, max_pos):
    d_model = num_heads * head_dim
    keys = iter(jax.random.split(key, 16 + 4 * num_layers))
    p = {
        "num_heads": num_heads,
        # SAGE_OneHot2 (2-layer mean-aggregation GraphSAGE)
        "sage_w1_self": _xavier(next(keys), (in_channels, hidden_channels)),
        "sage_w1_neigh": _xavier(next(keys), (in_channels, hidden_channels)),
        "sage_b1": jnp.zeros((hidden_channels,), jnp.float32),
        "sage_w2_self": _xavier(next(keys), (hidden_channels, hidden_channels)),
        "sage_w2_neigh": _xavier(next(keys), (hidden_channels, hidden_channels)),
        "sage_b2": jnp.zeros((hidden_channels,), jnp.float32),
        # MegaRegressor_MLP
        "w_emb": _xavier(next(keys), (1, d_model)),
        "b_emb": jnp.zeros((d_model,), jnp.float32),
        "pos_emb": 0.02 * jax.random.normal(next(keys), (max_pos, d_model), jnp.float32),
        "w_fc1": _xavier(next(keys), (d_model, hidden1)),
        "b_fc1": jnp.zeros((hidden1,), jnp.float32),
        "w_fc2": _xavier(next(keys), (hidden1, hidden2)),
        "b_fc2": jnp.zeros((hidden2,), jnp.float32),
        "w_out": _xavier(next(keys), (hidden2, out_channels)),
        "b_out": jnp.zeros((out_channels,), jnp.float32),
    }
    # per-layer attention weights: QKV fused along the output axis, then
    # stacked over layers so the fused kernel can index them statically.
    wqkv, bqkv, wo, bo = [], [], [], []
    for _ in range(num_layers):
        wq = _xavier(next(keys), (d_model, d_model))
        wk = _xavier(next(keys), (d_model, d_model))
        wv = _xavier(next(keys), (d_model, d_model))
        wqkv.append(jnp.concatenate([wq, wk, wv], axis=1))      # (D, 3D)
        bqkv.append(jnp.zeros((1, 3 * d_model), jnp.float32))
        wo.append(_xavier(next(keys), (d_model, d_model)))
        bo.append(jnp.zeros((1, d_model), jnp.float32))
    p["wqkv"] = jnp.stack(wqkv)   # (L, D, 3D)
    p["bqkv"] = jnp.stack(bqkv)   # (L, 1, 3D)
    p["wo"] = jnp.stack(wo)       # (L, D, D)
    p["bo"] = jnp.stack(bo)       # (L, 1, D)
    return p


# ----------------------------- forward passes ------------------------------

def sage_forward(p, x, edge_index):
    n = x.shape[0]
    # dense row-normalized adjacency (messages flow src -> dst, mean aggr)
    # TODO(synk): dense O(N^2) adjacency is fine at toy N; use a tiled /
    # scalar-prefetch sparse aggregation for real graph sizes (and size tiles
    # for v7x's 64 MiB VMEM).
    adj = jnp.zeros((n, n), jnp.float32).at[edge_index[1], edge_index[0]].add(1.0)
    deg = jnp.maximum(adj.sum(axis=1, keepdims=True), 1.0)
    adj = adj / deg
    return pallas_sage(adj, x, p)   # (N, hidden_channels)


def mega_forward(p, seq):
    # seq: (B, S, 1)  — "sage_embeddings[:batch_size].unsqueeze(2)"
    b, s, _ = seq.shape
    out = pallas_mega(p, seq.reshape(b * s, 1), b, s)   # (B, out_channels)
    return out[:, 0], None


def megagraphsage_forward(p, x, edge_index, inputs_embeds, attention_mask, batch_size):
    # inputs_embeds / attention_mask are accepted but unused — same as the
    # reference PyTorch forward.
    sage_embeddings = sage_forward(p, x, edge_index)
    seq = sage_embeddings[:batch_size][:, :, None]  # == .unsqueeze(2)
    bert_output, _ = mega_forward(p, seq)
    return bert_output


# ----------------------------------- main ----------------------------------

if __name__ == "__main__":
    key = jax.random.PRNGKey(0)
    k_param, k_x, k_src, k_dst = jax.random.split(key, 4)

    # small synthetic shapes consistent with the module
    num_nodes = 16
    in_channels = 8
    hidden_channels = 32   # SAGE embedding dim == Mega sequence length
    out_channels = 1
    hidden1, hidden2 = 16, 8
    num_layers, num_heads, head_dim = 2, 3, 8
    max_pos = 64
    batch_size = 4
    num_edges = 40

    params = init_params(
        k_param,
        in_channels=in_channels, hidden_channels=hidden_channels,
        out_channels=out_channels, hidden1=hidden1, hidden2=hidden2,
        num_layers=num_layers, num_heads=num_heads, head_dim=head_dim,
        max_pos=max_pos,
    )

    x = jax.random.normal(k_x, (num_nodes, in_channels), jnp.float32)
    src = jax.random.randint(k_src, (num_edges,), 0, num_nodes)
    dst = jax.random.randint(k_dst, (num_edges,), 0, num_nodes)
    edge_index = jnp.stack([src, dst], axis=0)  # (2, E)

    out = megagraphsage_forward(params, x, edge_index, None, None, batch_size)
    out = jax.block_until_ready(out)
    assert out.shape == (batch_size,)
    print("KERNEL_OK")
</pallas_src>

<mosaic_0001>
module attributes {stable_mosaic.version = 11 : i64} {
  func.func @_sage_kernel(%arg0: memref<16x16xf32, #tpu.memory_space<vmem>>, %arg1: memref<16x8xf32, #tpu.memory_space<vmem>>, %arg2: memref<8x32xf32, #tpu.memory_space<vmem>>, %arg3: memref<8x32xf32, #tpu.memory_space<vmem>>, %arg4: memref<1x32xf32, #tpu.memory_space<vmem>>, %arg5: memref<32x32xf32, #tpu.memory_space<vmem>>, %arg6: memref<32x32xf32, #tpu.memory_space<vmem>>, %arg7: memref<1x32xf32, #tpu.memory_space<vmem>>, %arg8: memref<16x32xf32, #tpu.memory_space<vmem>>) attributes {dimension_semantics = [], scalar_prefetch = 0 : i64, scratch_operands = 0 : i64, tpu.core_type = #tpu.core_type<tc>} {
    %c0 = arith.constant 0 : index
    %c0_0 = arith.constant 0 : index
    %0 = vector.load %arg0[%c0, %c0_0] : memref<16x16xf32, #tpu.memory_space<vmem>>, vector<16x16xf32>
    %c0_1 = arith.constant 0 : index
    %c0_2 = arith.constant 0 : index
    %1 = vector.load %arg1[%c0_1, %c0_2] : memref<16x8xf32, #tpu.memory_space<vmem>>, vector<16x8xf32>
    %cst = arith.constant dense<0.000000e+00> : vector<16x8xf32>
    %2 = tpu.matmul %0, %1, %cst {dimension_numbers = #tpu.dot_dimension_numbers<[1], [0], [0], [1], [0, 0, 1, 1], [], []>} : vector<16x16xf32>, vector<16x8xf32>, vector<16x8xf32> -> vector<16x8xf32>
    %c0_3 = arith.constant 0 : index
    %c0_4 = arith.constant 0 : index
    %3 = vector.load %arg2[%c0_3, %c0_4] : memref<8x32xf32, #tpu.memory_space<vmem>>, vector<8x32xf32>
    %cst_5 = arith.constant dense<0.000000e+00> : vector<16x32xf32>
    %4 = tpu.matmul %1, %3, %cst_5 {dimension_numbers = #tpu.dot_dimension_numbers<[1], [0], [0], [1], [0, 0, 1, 1], [], []>} : vector<16x8xf32>, vector<8x32xf32>, vector<16x32xf32> -> vector<16x32xf32>
    %c0_6 = arith.constant 0 : index
    %c0_7 = arith.constant 0 : index
    %5 = vector.load %arg3[%c0_6, %c0_7] : memref<8x32xf32, #tpu.memory_space<vmem>>, vector<8x32xf32>
    %cst_8 = arith.constant dense<0.000000e+00> : vector<16x32xf32>
    %6 = tpu.matmul %2, %5, %cst_8 {dimension_numbers = #tpu.dot_dimension_numbers<[1], [0], [0], [1], [0, 0, 1, 1], [], []>} : vector<16x8xf32>, vector<8x32xf32>, vector<16x32xf32> -> vector<16x32xf32>
    %7 = arith.addf %4, %6 : vector<16x32xf32>
    %c0_9 = arith.constant 0 : index
    %c0_10 = arith.constant 0 : index
    %8 = vector.load %arg4[%c0_9, %c0_10] : memref<1x32xf32, #tpu.memory_space<vmem>>, vector<1x32xf32>
    %9 = vector.broadcast %8 : vector<1x32xf32> to vector<16x32xf32>
    %10 = arith.addf %7, %9 : vector<16x32xf32>
    %cst_11 = arith.constant 0.000000e+00 : f32
    %11 = vector.broadcast %cst_11 : f32 to vector<16x32xf32>
    %12 = arith.maximumf %10, %11 : vector<16x32xf32>
    %cst_12 = arith.constant dense<0.000000e+00> : vector<16x32xf32>
    %13 = tpu.matmul %0, %12, %cst_12 {dimension_numbers = #tpu.dot_dimension_numbers<[1], [0], [0], [1], [0, 0, 1, 1], [], []>} : vector<16x16xf32>, vector<16x32xf32>, vector<16x32xf32> -> vector<16x32xf32>
    %c0_13 = arith.constant 0 : index
    %c0_14 = arith.constant 0 : index
    %14 = vector.load %arg5[%c0_13, %c0_14] : memref<32x32xf32, #tpu.memory_space<vmem>>, vector<32x32xf32>
    %cst_15 = arith.constant dense<0.000000e+00> : vector<16x32xf32>
    %15 = tpu.matmul %12, %14, %cst_15 {dimension_numbers = #tpu.dot_dimension_numbers<[1], [0], [0], [1], [0, 0, 1, 1], [], []>} : vector<16x32xf32>, vector<32x32xf32>, vector<16x32xf32> -> vector<16x32xf32>
    %c0_16 = arith.constant 0 : index
    %c0_17 = arith.constant 0 : index
    %16 = vector.load %arg6[%c0_16, %c0_17] : memref<32x32xf32, #tpu.memory_space<vmem>>, vector<32x32xf32>
    %cst_18 = arith.constant dense<0.000000e+00> : vector<16x32xf32>
    %17 = tpu.matmul %13, %16, %cst_18 {dimension_numbers = #tpu.dot_dimension_numbers<[1], [0], [0], [1], [0, 0, 1, 1], [], []>} : vector<16x32xf32>, vector<32x32xf32>, vector<16x32xf32> -> vector<16x32xf32>
    %18 = arith.addf %15, %17 : vector<16x32xf32>
    %c0_19 = arith.constant 0 : index
    %c0_20 = arith.constant 0 : index
    %19 = vector.load %arg7[%c0_19, %c0_20] : memref<1x32xf32, #tpu.memory_space<vmem>>, vector<1x32xf32>
    %20 = vector.broadcast %19 : vector<1x32xf32> to vector<16x32xf32>
    %21 = arith.addf %18, %20 : vector<16x32xf32>
    %c0_21 = arith.constant 0 : index
    %c0_22 = arith.constant 0 : index
    %22 = vector.load %arg8[%c0_21, %c0_22] : memref<16x32xf32, #tpu.memory_space<vmem>>, vector<16x32xf32>
    tpu.vector_store %arg8[%c0_21, %c0_22], %21 {strides = array<i32>} : memref<16x32xf32, #tpu.memory_space<vmem>>, vector<16x32xf32>,
    return
  }
}

</mosaic_0001>

<llo_original>
// kernel: tpu_custom_call.1
$region0: #{tpu_custom_call.1}
  #allocation0 [shape = 'u32[]', space=smem, size = 0x4, offset = 0x4, fixed_abs, tag = 'smem constant byte address 0x4 - core index']
  #allocation1 [shape = 'u32[144,128]{1,0:T(1,128)}', space=vmem, size = 0x12000, scoped, tag = 'internal scratch']
  %s0 = inlined_call_operand.hbm [shape: f32[16,16], index: 0, kind: input, shape index: {}]
  %s1 = inlined_call_operand.vmem [shape: f32[16,8], index: 1, kind: input, shape index: {}]
  %s2 = inlined_call_operand.hbm [shape: f32[8,32], index: 2, kind: input, shape index: {}]
  %s3 = inlined_call_operand.hbm [shape: f32[8,32], index: 3, kind: input, shape index: {}]
  %s4 = inlined_call_operand.vmem [shape: f32[1,32], index: 4, kind: input, shape index: {}]
  %s5 = inlined_call_operand.vmem [shape: f32[32,32], index: 5, kind: input, shape index: {}]
  %s6 = inlined_call_operand.hbm [shape: f32[32,32], index: 6, kind: input, shape index: {}]
  %s7 = inlined_call_operand.vmem [shape: f32[1,32], index: 7, kind: input, shape index: {}]
  %s8 = inlined_call_operand.hbm [shape: f32[16,32], index: 8, kind: output, shape index: {}]
  %s9 = sld [smem:[#allocation0]]
  $region58: #{tpu_custom_call.1} parent=0
    _
  %s11 = ssub.s32 1, %s9
  %s12 = scalar_select 0, %s11, %s9
  $region1: #{tpu_custom_call.1} parent=0
    #allocation2 [shape = 'u8[8192]{0}', space=vmem, size = 0x2000, scoped, tag = 'input window, operand 0, single buffered']
    #allocation3 [shape = 's32[1]{0}', space=sflag, size = 0x4, scoped, tag = 'scoped memory for tpu_custom_call.1']
    #allocation4 [shape = 's32[1]{0}', space=sflag, size = 0x4, scoped, tag = 'scoped memory for tpu_custom_call.1']
    #allocation5 [shape = 'u8[4096]{0}', space=vmem, size = 0x1000, scoped, tag = 'input window, operand 2, single buffered']
    #allocation6 [shape = 's32[1]{0}', space=sflag, size = 0x4, scoped, tag = 'scoped memory for tpu_custom_call.1']
    #allocation7 [shape = 'u8[4096]{0}', space=vmem, size = 0x1000, scoped, tag = 'input window, operand 3, single buffered']
    #allocation8 [shape = 'u8[16384]{0}', space=vmem, size = 0x4000, scoped, tag = 'input window, operand 6, single buffered']
    #allocation9 [shape = 's32[1]{0}', space=sflag, size = 0x4, scoped, tag = 'scoped memory for tpu_custom_call.1']
    #allocation10 [shape = 'u8[8192]{0}', space=vmem, size = 0x2000, scoped, tag = 'output window, operand 0, single buffered']
    %13 = vsyncpa [#allocation3], 0
    %14 = vsyncpa [#allocation6], 0
    %15 = vsyncpa [#allocation9], 0
    %16 = vsyncpa [#allocation4], 0
    // Predicated region
    $region2: #{tpu_custom_call.1} parent=1 // pred_check
      _
    $region3: #{tpu_custom_call.1} parent=1 // pred_check_branch
      %18 = sbr.rel (0) target = $region5
    $region4: #{tpu_custom_call.1} parent=1 // pred_region
      %s20 = ssub.s32 256, 256
      %21 = vsyncadd [#allocation3], %s20
      %s22 = sshll.u32 [#allocation2], 4
      %s23 = int_to_ptr.vmem [resolvable:$true] %s22
      %28 = dma.hbm_to_vmem [thread:$0]  %s0, 256, %s23, [#allocation3], 128, 128, 8
    $region5: #{tpu_custom_call.1} parent=1 // pred_fallthru
      _
    // Predicated region
    $region6: #{tpu_custom_call.1} parent=1 // pred_check
      _
    $region7: #{tpu_custom_call.1} parent=1 // pred_check_branch
      %30 = sbr.rel (0) target = $region9
    $region8: #{tpu_custom_call.1} parent=1 // pred_region
      _
    $region9: #{tpu_custom_call.1} parent=1 // pred_fallthru
      _
    // Predicated region
    $region10: #{tpu_custom_call.1} parent=1 // pred_check
      _
    $region11: #{tpu_custom_call.1} parent=1 // pred_check_branch
      %32 = sbr.rel (0) target = $region13
    $region12: #{tpu_custom_call.1} parent=1 // pred_region
      %s34 = ssub.s32 128, 128
      %35 = vsyncadd [#allocation6], %s34
      %s37 = sshll.u32 [#allocation5], 4
      %s38 = int_to_ptr.vmem [resolvable:$true] %s37
      %40 = dma.hbm_to_vmem [thread:$0]  %s2, 128, %s38, [#allocation6]
    $region13: #{tpu_custom_call.1} parent=1 // pred_fallthru
      _
    // Predicated region
    $region14: #{tpu_custom_call.1} parent=1 // pred_check
      _
    $region15: #{tpu_custom_call.1} parent=1 // pred_check_branch
      %42 = sbr.rel (0) target = $region17
    $region16: #{tpu_custom_call.1} parent=1 // pred_region
      %s44 = ssub.s32 128, 128
      %45 = vsyncadd [#allocation6], %s44
      %s47 = sshll.u32 [#allocation7], 4
      %s48 = int_to_ptr.vmem [resolvable:$true] %s47
      %50 = dma.hbm_to_vmem [thread:$0]  %s3, 128, %s48, [#allocation6]
    $region17: #{tpu_custom_call.1} parent=1 // pred_fallthru
      _
    // Predicated region
    $region18: #{tpu_custom_call.1} parent=1 // pred_check
      _
    $region19: #{tpu_custom_call.1} parent=1 // pred_check_branch
      %52 = sbr.rel (0) target = $region21
    $region20: #{tpu_custom_call.1} parent=1 // pred_region
      _
    $region21: #{tpu_custom_call.1} parent=1 // pred_fallthru
      _
    // Predicated region
    $region22: #{tpu_custom_call.1} parent=1 // pred_check
      _
    $region23: #{tpu_custom_call.1} parent=1 // pred_check_branch
      %54 = sbr.rel (0) target = $region25
    $region24: #{tpu_custom_call.1} parent=1 // pred_region
      _
    $region25: #{tpu_custom_call.1} parent=1 // pred_fallthru
      _
    // Predicated region
    $region26: #{tpu_custom_call.1} parent=1 // pred_check
      _
    $region27: #{tpu_custom_call.1} parent=1 // pred_check_branch
      %56 = sbr.rel (0) target = $region29
    $region28: #{tpu_custom_call.1} parent=1 // pred_region
      %s58 = ssub.s32 512, 512
      %59 = vsyncadd [#allocation9], %s58
      %s60 = sshll.u32 [#allocation8], 4
      %s61 = int_to_ptr.vmem [resolvable:$true] %s60
      %66 = dma.hbm_to_vmem [thread:$0]  %s6, 512, %s61, [#allocation9], 128, 128, 8
    $region29: #{tpu_custom_call.1} parent=1 // pred_fallthru
      _
    // Predicated region
    $region30: #{tpu_custom_call.1} parent=1 // pred_check
      _
    $region31: #{tpu_custom_call.1} parent=1 // pred_check_branch
      %68 = sbr.rel (0) target = $region33
    $region32: #{tpu_custom_call.1} parent=1 // pred_region
      _
    $region33: #{tpu_custom_call.1} parent=1 // pred_fallthru
      _
    // Predicated region
    $region34: #{tpu_custom_call.1} parent=1 // pred_check
      _
    $region35: #{tpu_custom_call.1} parent=1 // pred_check_branch
      %70 = sbr.rel (0) target = $region37
    $region36: #{tpu_custom_call.1} parent=1 // pred_region
      %71 = dma.done [#allocation3], 256
    $region37: #{tpu_custom_call.1} parent=1 // pred_fallthru
      _
    // Predicated region
    $region38: #{tpu_custom_call.1} parent=1 // pred_check
      _
    $region39: #{tpu_custom_call.1} parent=1 // pred_check_branch
      %73 = sbr.rel (0) target = $region41
    $region40: #{tpu_custom_call.1} parent=1 // pred_region
      %74 = dma.done [#allocation6], 128
    $region41: #{tpu_custom_call.1} parent=1 // pred_fallthru
      _
    // Predicated region
    $region42: #{tpu_custom_call.1} parent=1 // pred_check
      _
    $region43: #{tpu_custom_call.1} parent=1 // pred_check_branch
      %76 = sbr.rel (0) target = $region45
    $region44: #{tpu_custom_call.1} parent=1 // pred_region
      %77 = dma.done [#allocation6], 128
    $region45: #{tpu_custom_call.1} parent=1 // pred_fallthru
      _
    // Predicated region
    $region46: #{tpu_custom_call.1} parent=1 // pred_check
      _
    $region47: #{tpu_custom_call.1} parent=1 // pred_check_branch
      %79 = sbr.rel (0) target = $region49
    $region48: #{tpu_custom_call.1} parent=1 // pred_region
      %80 = dma.done [#allocation9], 512
    $region49: #{tpu_custom_call.1} parent=1 // pred_fallthru
      _
    %v81 = vld [vmem:[#allocation2] sm:$0xff]
    %v82 = vld [vmem:[#allocation2 + $0x8] sm:$0xff]
    %v83 = vld [vmem:[%s1] sm:$0xff]
    %v84 = vld [vmem:[%s1 + $0x8] sm:$0xff]
    %vm85 = vcmask 130048
    %v87 = vsel %vm85, %v81, 0
    %v90 = vsel %vm85, %v82, 0
    %92 = vmatprep.subr.mxu0 0.0
    %93 = vmatpush1.msra.mxu0 0.0
    %94 = vmatprep.subr.mxu0 0.0
    %95 = vmatpush1.msra.mxu0 0.0
    %96 = vmatprep.subr.mxu0 0.0
    %97 = vmatpush1.msra.mxu0 0.0
    %98 = vmatprep.subr.mxu0 0.0
    %99 = vmatpush1.msra.mxu0 0.0
    %100 = vmatprep.subr.mxu0 0.0
    %101 = vmatpush1.msra.mxu0 0.0
    %102 = vmatprep.subr.mxu0 0.0
    %103 = vmatpush1.msra.mxu0 0.0
    %104 = vmatprep.subr.mxu0 0.0
    %105 = vmatpush1.msra.mxu0 0.0
    %106 = vmatprep.subr.mxu0 0.0
    %107 = vmatpush1.msra.mxu0 0.0
    %108 = vmatprep.subr.mxu0 0.0
    %109 = vmatpush1.msra.mxu0 0.0
    %110 = vmatprep.subr.mxu0 0.0
    %111 = vmatpush1.msra.mxu0 0.0
    %112 = vmatprep.subr.mxu0 0.0
    %113 = vmatpush1.msra.mxu0 0.0
    %114 = vmatprep.subr.mxu0 0.0
    %115 = vmatpush1.msra.mxu0 0.0
    %116 = vmatprep.subr.mxu0 0.0
    %117 = vmatpush1.msra.mxu0 0.0
    %118 = vmatprep.subr.mxu0 0.0
    %119 = vmatpush1.msra.mxu0 0.0
    %120 = vmatprep.subr.mxu0 0.0
    %121 = vmatpush1.msra.mxu0 %v84
    %122 = vmatprep.subr.mxu0 0.0
    %123 = vmatpush1.msra.mxu0 %v83
    %124 = vmatprep.subr.mxu0 0.0
    %125 = vmatpush2.msra.mxu0 0.0
    %126 = vmatprep.subr.mxu0 0.0
    %127 = vmatpush2.msra.mxu0 0.0
    %128 = vmatprep.subr.mxu0 0.0
    %129 = vmatpush2.msra.mxu0 0.0
    %130 = vmatprep.subr.mxu0 0.0
    %131 = vmatpush2.msra.mxu0 0.0
    %132 = vmatprep.subr.mxu0 0.0
    %133 = vmatpush2.msra.mxu0 0.0
    %134 = vmatprep.subr.mxu0 0.0
    %135 = vmatpush2.msra.mxu0 0.0
    %136 = vmatprep.subr.mxu0 0.0
    %137 = vmatpush2.msra.mxu0 0.0
    %138 = vmatprep.subr.mxu0 0.0
    %139 = vmatpush2.msra.mxu0 0.0
    %140 = vmatprep.subr.mxu0 0.0
    %141 = vmatpush2.msra.mxu0 0.0
    %142 = vmatprep.subr.mxu0 0.0
    %143 = vmatpush2.msra.mxu0 0.0
    %144 = vmatprep.subr.mxu0 0.0
    %145 = vmatpush2.msra.mxu0 0.0
    %146 = vmatprep.subr.mxu0 0.0
    %147 = vmatpush2.msra.mxu0 0.0
    %148 = vmatprep.subr.mxu0 0.0
    %149 = vmatpush2.msra.mxu0 0.0
    %150 = vmatprep.subr.mxu0 0.0
    %151 = vmatpush2.msra.mxu0 0.0
    %152 = vmatprep.subr.mxu0 0.0
    %153 = vmatpush2.msra.mxu0 0.0
    %154 = vmatprep.subr.mxu0 0.0
    %155 = vmatpush2.msra.mxu0 0.0
    %156 = vmatprep.mubr.f32.mxu0 0.0
    %157 = vmatmul.mubr.f32.gmra.mxu0 %v87
    %v158 = vpop.f32.mrf.mxu0
    %v159 = vadd.f32 0.0, %v158
    %v160 = vpop.f32.mrf.mxu0
    %161 = vmatprep.mubr.f32.mxu0 0.0
    %162 = vmatmul.mubr.f32.gmra.mxu0 %v90
    %v163 = vpop.f32.mrf.mxu0
    %v164 = vadd.f32 0.0, %v163
    %v165 = vpop.f32.mrf.mxu0
    %166 = vdwg.mxu0
    %v167 = vld [vmem:[#allocation5] sm:$0xff]
    %v168 = vld [vmem:[#allocation7] sm:$0xff]
    %vm169 = vcmask 64512
    %v171 = vsel %vm169, %v159, 0
    %v174 = vsel %vm169, %v164, 0
    %176 = vmatprep.subr.mxu0 0.0
    %177 = vmatpush1.msra.mxu0 0.0
    %178 = vmatprep.subr.mxu0 0.0
    %179 = vmatpush1.msra.mxu0 0.0
    %180 = vmatprep.subr.mxu0 0.0
    %181 = vmatpush1.msra.mxu0 0.0
    %182 = vmatprep.subr.mxu0 0.0
    %183 = vmatpush1.msra.mxu0 0.0
    %184 = vmatprep.subr.mxu0 0.0
    %185 = vmatpush1.msra.mxu0 0.0
    %186 = vmatprep.subr.mxu0 0.0
    %187 = vmatpush1.msra.mxu0 0.0
    %188 = vmatprep.subr.mxu0 0.0
    %189 = vmatpush1.msra.mxu0 0.0
    %190 = vmatprep.subr.mxu0 0.0
    %191 = vmatpush1.msra.mxu0 0.0
    %192 = vmatprep.subr.mxu0 0.0
    %193 = vmatpush1.msra.mxu0 0.0
    %194 = vmatprep.subr.mxu0 0.0
    %195 = vmatpush1.msra.mxu0 0.0
    %196 = vmatprep.subr.mxu0 0.0
    %197 = vmatpush1.msra.mxu0 0.0
    %198 = vmatprep.subr.mxu0 0.0
    %199 = vmatpush1.msra.mxu0 0.0
    %200 = vmatprep.subr.mxu0 0.0
    %201 = vmatpush1.msra.mxu0 0.0
    %202 = vmatprep.subr.mxu0 0.0
    %203 = vmatpush1.msra.mxu0 0.0
    %204 = vmatprep.subr.mxu0 0.0
    %205 = vmatpush1.msra.mxu0 0.0
    %206 = vmatprep.subr.mxu0 0.0
    %207 = vmatpush1.msra.mxu0 %v168
    %208 = vmatprep.subr.mxu0 0.0
    %209 = vmatpush2.msra.mxu0 0.0
    %210 = vmatprep.subr.mxu0 0.0
    %211 = vmatpush2.msra.mxu0 0.0
    %212 = vmatprep.subr.mxu0 0.0
    %213 = vmatpush2.msra.mxu0 0.0
    %214 = vmatprep.subr.mxu0 0.0
    %215 = vmatpush2.msra.mxu0 0.0
    %216 = vmatprep.subr.mxu0 0.0
    %217 = vmatpush2.msra.mxu0 0.0
    %218 = vmatprep.subr.mxu0 0.0
    %219 = vmatpush2.msra.mxu0 0.0
    %220 = vmatprep.subr.mxu0 0.0
    %221 = vmatpush2.msra.mxu0 0.0
    %222 = vmatprep.subr.mxu0 0.0
    %223 = vmatpush2.msra.mxu0 0.0
    %224 = vmatprep.subr.mxu0 0.0
    %225 = vmatpush2.msra.mxu0 0.0
    %226 = vmatprep.subr.mxu0 0.0
    %227 = vmatpush2.msra.mxu0 0.0
    %228 = vmatprep.subr.mxu0 0.0
    %229 = vmatpush2.msra.mxu0 0.0
    %230 = vmatprep.subr.mxu0 0.0
    %231 = vmatpush2.msra.mxu0 0.0
    %232 = vmatprep.subr.mxu0 0.0
    %233 = vmatpush2.msra.mxu0 0.0
    %234 = vmatprep.subr.mxu0 0.0
    %235 = vmatpush2.msra.mxu0 0.0
    %236 = vmatprep.subr.mxu0 0.0
    %237 = vmatpush2.msra.mxu0 0.0
    %238 = vmatprep.subr.mxu0 0.0
    %239 = vmatpush2.msra.mxu0 0.0
    %240 = vmatprep.mubr.f32.mxu0 0.0
    %241 = vmatmul.mubr.f32.gmra.mxu0 %v171
    %v242 = vpop.f32.mrf.mxu0
    %v243 = vadd.f32 0.0, %v242
    %v244 = vpop.f32.mrf.mxu0
    %245 = vmatprep.mubr.f32.mxu0 0.0
    %246 = vmatmul.mubr.f32.gmra.mxu0 %v174
    %v247 = vpop.f32.mrf.mxu0
    %v248 = vadd.f32 0.0, %v247
    %v249 = vpop.f32.mrf.mxu0
    %250 = vdwg.mxu0
    %v252 = vsel %vm169, %v83, 0
    %v255 = vsel %vm169, %v84, 0
    %257 = vmatprep.subr.mxu0 0.0
    %258 = vmatpush1.msra.mxu0 0.0
    %259 = vmatprep.subr.mxu0 0.0
    %260 = vmatpush1.msra.mxu0 0.0
    %261 = vmatprep.subr.mxu0 0.0
    %262 = vmatpush1.msra.mxu0 0.0
    %263 = vmatprep.subr.mxu0 0.0
    %264 = vmatpush1.msra.mxu0 0.0
    %265 = vmatprep.subr.mxu0 0.0
    %266 = vmatpush1.msra.mxu0 0.0
    %267 = vmatprep.subr.mxu0 0.0
    %268 = vmatpush1.msra.mxu0 0.0
    %269 = vmatprep.subr.mxu0 0.0
    %270 = vmatpush1.msra.mxu0 0.0
    %271 = vmatprep.subr.mxu0 0.0
    %272 = vmatpush1.msra.mxu0 0.0
    %273 = vmatprep.subr.mxu0 0.0
    %274 = vmatpush1.msra.mxu0 0.0
    %275 = vmatprep.subr.mxu0 0.0
    %276 = vmatpush1.msra.mxu0 0.0
    %277 = vmatprep.subr.mxu0 0.0
    %278 = vmatpush1.msra.mxu0 0.0
    %279 = vmatprep.subr.mxu0 0.0
    %280 = vmatpush1.msra.mxu0 0.0
    %281 = vmatprep.subr.mxu0 0.0
    %282 = vmatpush1.msra.mxu0 0.0
    %283 = vmatprep.subr.mxu0 0.0
    %284 = vmatpush1.msra.mxu0 0.0
    %285 = vmatprep.subr.mxu0 0.0
    %286 = vmatpush1.msra.mxu0 0.0
    %287 = vmatprep.subr.mxu0 0.0
    %288 = vmatpush1.msra.mxu0 %v167
    %289 = vmatprep.subr.mxu0 0.0
    %290 = vmatpush2.msra.mxu0 0.0
    %291 = vmatprep.subr.mxu0 0.0
    %292 = vmatpush2.msra.mxu0 0.0
    %293 = vmatprep.subr.mxu0 0.0
    %294 = vmatpush2.msra.mxu0 0.0
    %295 = vmatprep.subr.mxu0 0.0
    %296 = vmatpush2.msra.mxu0 0.0
    %297 = vmatprep.subr.mxu0 0.0
    %298 = vmatpush2.msra.mxu0 0.0
    %299 = vmatprep.subr.mxu0 0.0
    %300 = vmatpush2.msra.mxu0 0.0
    %301 = vmatprep.subr.mxu0 0.0
    %302 = vmatpush2.msra.mxu0 0.0
    %303 = vmatprep.subr.mxu0 0.0
    %304 = vmatpush2.msra.mxu0 0.0
    %305 = vmatprep.subr.mxu0 0.0
    %306 = vmatpush2.msra.mxu0 0.0
    %307 = vmatprep.subr.mxu0 0.0
    %308 = vmatpush2.msra.mxu0 0.0
    %309 = vmatprep.subr.mxu0 0.0
    %310 = vmatpush2.msra.mxu0 0.0
    %311 = vmatprep.subr.mxu0 0.0
    %312 = vmatpush2.msra.mxu0 0.0
    %313 = vmatprep.subr.mxu0 0.0
    %314 = vmatpush2.msra.mxu0 0.0
    %315 = vmatprep.subr.mxu0 0.0
    %316 = vmatpush2.msra.mxu0 0.0
    %317 = vmatprep.subr.mxu0 0.0
    %318 = vmatpush2.msra.mxu0 0.0
    %319 = vmatprep.subr.mxu0 0.0
    %320 = vmatpush2.msra.mxu0 0.0
    %321 = vmatprep.mubr.f32.mxu0 0.0
    %322 = vmatmul.mubr.f32.gmra.mxu0 %v252
    %v323 = vpop.f32.mrf.mxu0
    %v324 = vadd.f32 %v243, %v323
    %v325 = vpop.f32.mrf.mxu0
    %326 = vmatprep.mubr.f32.mxu0 0.0
    %327 = vmatmul.mubr.f32.gmra.mxu0 %v255
    %v328 = vpop.f32.mrf.mxu0
    %v329 = vadd.f32 %v248, %v328
    %v330 = vpop.f32.mrf.mxu0
    %331 = vdwg.mxu0
    %v332 = vld [vmem:[%s4] sm:$0x1]
    %v334 = vlaneseq
    %v335 = vshrl.u32 %v334, 7
    %v336 = vsub.s32 0, %v335
    %v337 = vrot.slane %v332, %v336
    %v339 = vadd.f32 %v324, %v337
    %v340 = vadd.f32 %v329, %v337
    %v341 = vmax.f32 %v339, 0.0
    %v342 = vmax.f32 %v340, 0.0
    %343 = vmatprep.subr.mxu0 0.0
    %344 = vmatpush1.msra.mxu0 0.0
    %345 = vmatprep.subr.mxu0 0.0
    %346 = vmatpush1.msra.mxu0 0.0
    %347 = vmatprep.subr.mxu0 0.0
    %348 = vmatpush1.msra.mxu0 0.0
    %349 = vmatprep.subr.mxu0 0.0
    %350 = vmatpush1.msra.mxu0 0.0
    %351 = vmatprep.subr.mxu0 0.0
    %352 = vmatpush1.msra.mxu0 0.0
    %353 = vmatprep.subr.mxu0 0.0
    %354 = vmatpush1.msra.mxu0 0.0
    %355 = vmatprep.subr.mxu0 0.0
    %356 = vmatpush1.msra.mxu0 0.0
    %357 = vmatprep.subr.mxu0 0.0
    %358 = vmatpush1.msra.mxu0 0.0
    %359 = vmatprep.subr.mxu0 0.0
    %360 = vmatpush1.msra.mxu0 0.0
    %361 = vmatprep.subr.mxu0 0.0
    %362 = vmatpush1.msra.mxu0 0.0
    %363 = vmatprep.subr.mxu0 0.0
    %364 = vmatpush1.msra.mxu0 0.0
    %365 = vmatprep.subr.mxu0 0.0
    %366 = vmatpush1.msra.mxu0 0.0
    %367 = vmatprep.subr.mxu0 0.0
    %368 = vmatpush1.msra.mxu0 0.0
    %369 = vmatprep.subr.mxu0 0.0
    %370 = vmatpush1.msra.mxu0 0.0
    %371 = vmatprep.subr.mxu0 0.0
    %372 = vmatpush1.msra.mxu0 %v342
    %373 = vmatprep.subr.mxu0 0.0
    %374 = vmatpush1.msra.mxu0 %v341
    %375 = vmatprep.subr.mxu0 0.0
    %376 = vmatpush2.msra.mxu0 0.0
    %377 = vmatprep.subr.mxu0 0.0
    %378 = vmatpush2.msra.mxu0 0.0
    %379 = vmatprep.subr.mxu0 0.0
    %380 = vmatpush2.msra.mxu0 0.0
    %381 = vmatprep.subr.mxu0 0.0
    %382 = vmatpush2.msra.mxu0 0.0
    %383 = vmatprep.subr.mxu0 0.0
    %384 = vmatpush2.msra.mxu0 0.0
    %385 = vmatprep.subr.mxu0 0.0
    %386 = vmatpush2.msra.mxu0 0.0
    %387 = vmatprep.subr.mxu0 0.0
    %388 = vmatpush2.msra.mxu0 0.0
    %389 = vmatprep.subr.mxu0 0.0
    %390 = vmatpush2.msra.mxu0 0.0
    %391 = vmatprep.subr.mxu0 0.0
    %392 = vmatpush2.msra.mxu0 0.0
    %393 = vmatprep.subr.mxu0 0.0
    %394 = vmatpush2.msra.mxu0 0.0
    %395 = vmatprep.subr.mxu0 0.0
    %396 = vmatpush2.msra.mxu0 0.0
    %397 = vmatprep.subr.mxu0 0.0
    %398 = vmatpush2.msra.mxu0 0.0
    %399 = vmatprep.subr.mxu0 0.0
    %400 = vmatpush2.msra.mxu0 0.0
    %401 = vmatprep.subr.mxu0 0.0
    %402 = vmatpush2.msra.mxu0 0.0
    %403 = vmatprep.subr.mxu0 0.0
    %404 = vmatpush2.msra.mxu0 0.0
    %405 = vmatprep.subr.mxu0 0.0
    %406 = vmatpush2.msra.mxu0 0.0
    %407 = vmatprep.mubr.f32.mxu0 0.0
    %408 = vmatmul.mubr.f32.gmra.mxu0 %v87
    %v409 = vpop.f32.mrf.mxu0
    %v410 = vadd.f32 0.0, %v409
    %v411 = vpop.f32.mrf.mxu0
    %412 = vmatprep.mubr.f32.mxu0 0.0
    %413 = vmatmul.mubr.f32.gmra.mxu0 %v90
    %v414 = vpop.f32.mrf.mxu0
    %v415 = vadd.f32 0.0, %v414
    %v416 = vpop.f32.mrf.mxu0
    %417 = vdwg.mxu0
    %v418 = vld [vmem:[%s5] sm:$0xff]
    %v419 = vld [vmem:[%s5 + $0x8] sm:$0xff]
    %v420 = vld [vmem:[%s5 + $0x10] sm:$0xff]
    %v421 = vld [vmem:[%s5 + $0x18] sm:$0xff]
    %v422 = vld [vmem:[#allocation8] sm:$0xff]
    %v423 = vld [vmem:[#allocation8 + $0x8] sm:$0xff]
    %v424 = vld [vmem:[#allocation8 + $0x10] sm:$0xff]
    %v425 = vld [vmem:[#allocation8 + $0x18] sm:$0xff]
    %vm426 = vcmask 261120
    %v428 = vsel %vm426, %v410, 0
    %v431 = vsel %vm426, %v415, 0
    %433 = vmatprep.subr.mxu0 0.0
    %434 = vmatpush1.msra.mxu0 0.0
    %435 = vmatprep.subr.mxu0 0.0
    %436 = vmatpush1.msra.mxu0 0.0
    %437 = vmatprep.subr.mxu0 0.0
    %438 = vmatpush1.msra.mxu0 0.0
    %439 = vmatprep.subr.mxu0 0.0
    %440 = vmatpush1.msra.mxu0 0.0
    %441 = vmatprep.subr.mxu0 0.0
    %442 = vmatpush1.msra.mxu0 0.0
    %443 = vmatprep.subr.mxu0 0.0
    %444 = vmatpush1.msra.mxu0 0.0
    %445 = vmatprep.subr.mxu0 0.0
    %446 = vmatpush1.msra.mxu0 0.0
    %447 = vmatprep.subr.mxu0 0.0
    %448 = vmatpush1.msra.mxu0 0.0
    %449 = vmatprep.subr.mxu0 0.0
    %450 = vmatpush1.msra.mxu0 0.0
    %451 = vmatprep.subr.mxu0 0.0
    %452 = vmatpush1.msra.mxu0 0.0
    %453 = vmatprep.subr.mxu0 0.0
    %454 = vmatpush1.msra.mxu0 0.0
    %455 = vmatprep.subr.mxu0 0.0
    %456 = vmatpush1.msra.mxu0 0.0
    %457 = vmatprep.subr.mxu0 0.0
    %458 = vmatpush1.msra.mxu0 %v425
    %459 = vmatprep.subr.mxu0 0.0
    %460 = vmatpush1.msra.mxu0 %v424
    %461 = vmatprep.subr.mxu0 0.0
    %462 = vmatpush1.msra.mxu0 %v423
    %463 = vmatprep.subr.mxu0 0.0
    %464 = vmatpush1.msra.mxu0 %v422
    %465 = vmatprep.subr.mxu0 0.0
    %466 = vmatpush2.msra.mxu0 0.0
    %467 = vmatprep.subr.mxu0 0.0
    %468 = vmatpush2.msra.mxu0 0.0
    %469 = vmatprep.subr.mxu0 0.0
    %470 = vmatpush2.msra.mxu0 0.0
    %471 = vmatprep.subr.mxu0 0.0
    %472 = vmatpush2.msra.mxu0 0.0
    %473 = vmatprep.subr.mxu0 0.0
    %474 = vmatpush2.msra.mxu0 0.0
    %475 = vmatprep.subr.mxu0 0.0
    %476 = vmatpush2.msra.mxu0 0.0
    %477 = vmatprep.subr.mxu0 0.0
    %478 = vmatpush2.msra.mxu0 0.0
    %479 = vmatprep.subr.mxu0 0.0
    %480 = vmatpush2.msra.mxu0 0.0
    %481 = vmatprep.subr.mxu0 0.0
    %482 = vmatpush2.msra.mxu0 0.0
    %483 = vmatprep.subr.mxu0 0.0
    %484 = vmatpush2.msra.mxu0 0.0
    %485 = vmatprep.subr.mxu0 0.0
    %486 = vmatpush2.msra.mxu0 0.0
    %487 = vmatprep.subr.mxu0 0.0
    %488 = vmatpush2.msra.mxu0 0.0
    %489 = vmatprep.subr.mxu0 0.0
    %490 = vmatpush2.msra.mxu0 0.0
    %491 = vmatprep.subr.mxu0 0.0
    %492 = vmatpush2.msra.mxu0 0.0
    %493 = vmatprep.subr.mxu0 0.0
    %494 = vmatpush2.msra.mxu0 0.0
    %495 = vmatprep.subr.mxu0 0.0
    %496 = vmatpush2.msra.mxu0 0.0
    %497 = vmatprep.mubr.f32.mxu0 0.0
    %498 = vmatmul.mubr.f32.gmra.mxu0 %v428
    %v499 = vpop.f32.mrf.mxu0
    %v500 = vadd.f32 0.0, %v499
    %v501 = vpop.f32.mrf.mxu0
    %502 = vmatprep.mubr.f32.mxu0 0.0
    %503 = vmatmul.mubr.f32.gmra.mxu0 %v431
    %v504 = vpop.f32.mrf.mxu0
    %v505 = vadd.f32 0.0, %v504
    %v506 = vpop.f32.mrf.mxu0
    %507 = vdwg.mxu0
    %v509 = vsel %vm426, %v341, 0
    %v512 = vsel %vm426, %v342, 0
    %514 = vmatprep.subr.mxu0 0.0
    %515 = vmatpush1.msra.mxu0 0.0
    %516 = vmatprep.subr.mxu0 0.0
    %517 = vmatpush1.msra.mxu0 0.0
    %518 = vmatprep.subr.mxu0 0.0
    %519 = vmatpush1.msra.mxu0 0.0
    %520 = vmatprep.subr.mxu0 0.0
    %521 = vmatpush1.msra.mxu0 0.0
    %522 = vmatprep.subr.mxu0 0.0
    %523 = vmatpush1.msra.mxu0 0.0
    %524 = vmatprep.subr.mxu0 0.0
    %525 = vmatpush1.msra.mxu0 0.0
    %526 = vmatprep.subr.mxu0 0.0
    %527 = vmatpush1.msra.mxu0 0.0
    %528 = vmatprep.subr.mxu0 0.0
    %529 = vmatpush1.msra.mxu0 0.0
    %530 = vmatprep.subr.mxu0 0.0
    %531 = vmatpush1.msra.mxu0 0.0
    %532 = vmatprep.subr.mxu0 0.0
    %533 = vmatpush1.msra.mxu0 0.0
    %534 = vmatprep.subr.mxu0 0.0
    %535 = vmatpush1.msra.mxu0 0.0
    %536 = vmatprep.subr.mxu0 0.0
    %537 = vmatpush1.msra.mxu0 0.0
    %538 = vmatprep.subr.mxu0 0.0
    %539 = vmatpush1.msra.mxu0 %v421
    %540 = vmatprep.subr.mxu0 0.0
    %541 = vmatpush1.msra.mxu0 %v420
    %542 = vmatprep.subr.mxu0 0.0
    %543 = vmatpush1.msra.mxu0 %v419
    %544 = vmatprep.subr.mxu0 0.0
    %545 = vmatpush1.msra.mxu0 %v418
    %546 = vmatprep.subr.mxu0 0.0
    %547 = vmatpush2.msra.mxu0 0.0
    %548 = vmatprep.subr.mxu0 0.0
    %549 = vmatpush2.msra.mxu0 0.0
    %550 = vmatprep.subr.mxu0 0.0
    %551 = vmatpush2.msra.mxu0 0.0
    %552 = vmatprep.subr.mxu0 0.0
    %553 = vmatpush2.msra.mxu0 0.0
    %554 = vmatprep.subr.mxu0 0.0
    %555 = vmatpush2.msra.mxu0 0.0
    %556 = vmatprep.subr.mxu0 0.0
    %557 = vmatpush2.msra.mxu0 0.0
    %558 = vmatprep.subr.mxu0 0.0
    %559 = vmatpush2.msra.mxu0 0.0
    %560 = vmatprep.subr.mxu0 0.0
    %561 = vmatpush2.msra.mxu0 0.0
    %562 = vmatprep.subr.mxu0 0.0
    %563 = vmatpush2.msra.mxu0 0.0
    %564 = vmatprep.subr.mxu0 0.0
    %565 = vmatpush2.msra.mxu0 0.0
    %566 = vmatprep.subr.mxu0 0.0
    %567 = vmatpush2.msra.mxu0 0.0
    %568 = vmatprep.subr.mxu0 0.0
    %569 = vmatpush2.msra.mxu0 0.0
    %570 = vmatprep.subr.mxu0 0.0
    %571 = vmatpush2.msra.mxu0 0.0
    %572 = vmatprep.subr.mxu0 0.0
    %573 = vmatpush2.msra.mxu0 0.0
    %574 = vmatprep.subr.mxu0 0.0
    %575 = vmatpush2.msra.mxu0 0.0
    %576 = vmatprep.subr.mxu0 0.0
    %577 = vmatpush2.msra.mxu0 0.0
    %578 = vmatprep.mubr.f32.mxu0 0.0
    %579 = vmatmul.mubr.f32.gmra.mxu0 %v509
    %v580 = vpop.f32.mrf.mxu0
    %v581 = vadd.f32 %v500, %v580
    %v582 = vpop.f32.mrf.mxu0
    %583 = vmatprep.mubr.f32.mxu0 0.0
    %584 = vmatmul.mubr.f32.gmra.mxu0 %v512
    %v585 = vpop.f32.mrf.mxu0
    %v586 = vadd.f32 %v505, %v585
    %v587 = vpop.f32.mrf.mxu0
    %588 = vdwg.mxu0
    %v589 = vld [vmem:[%s7] sm:$0x1]
    %v591 = vlaneseq
    %v592 = vshrl.u32 %v591, 7
    %v593 = vsub.s32 0, %v592
    %v594 = vrot.slane %v589, %v593
    %v596 = vadd.f32 %v581, %v594
    %v597 = vadd.f32 %v586, %v594
    %598 = vst.msk [vmem:[#allocation10] sm:$0xff] %vm426, %v596
    %599 = vst.msk [vmem:[#allocation10 + $0x8] sm:$0xff] %vm426, %v597
    // Predicated region
    $region50: #{tpu_custom_call.1} parent=1 // pred_check
      _
    $region51: #{tpu_custom_call.1} parent=1 // pred_check_branch
      %601 = sbr.rel (0) target = $region53
    $region52: #{tpu_custom_call.1} parent=1 // pred_region
      %s603 = ssub.s32 256, 256
      %604 = vsyncadd [#allocation4], %s603
      %s605 = sshll.u32 [#allocation10], 4
      %s606 = int_to_ptr.vmem [resolvable:$true] %s605
      %611 = dma.vmem_to_hbm [thread:$0]  %s606, 256, %s8, [#allocation4], 128, 128, 8
    $region53: #{tpu_custom_call.1} parent=1 // pred_fallthru
      _
    // Predicated region
    $region54: #{tpu_custom_call.1} parent=1 // pred_check
      _
    $region55: #{tpu_custom_call.1} parent=1 // pred_check_branch
      %613 = sbr.rel (0) target = $region57
    $region56: #{tpu_custom_call.1} parent=1 // pred_region
      %614 = dma.done [#allocation4], 256
    $region57: #{tpu_custom_call.1} parent=1 // pred_fallthru
      _
    %615 = vsyncpa [#allocation3], 1
    %616 = vsyncpa [#allocation6], 1
    %617 = vsyncpa [#allocation9], 1
    %618 = vsyncpa [#allocation4], 1

</llo_original>
